<compile_context>
chip_gen: v7x
topology: tpu7x:2x2x1
jax: 0.10.0
libtpu: 0.0.40
codegen_flags: <defaults>
</compile_context>

<pallas_src>
import math
import functools

import jax
import jax.numpy as jnp
from jax.experimental import pallas as pl
from jax.experimental.pallas import tpu as pltpu

MINUTE_SIZE = 4
HOUR_SIZE = 24
WEEKDAY_SIZE = 7
DAY_SIZE = 32
MONTH_SIZE = 13

_K_ROWS = 128  # concatenated-table row count (80 real rows, zero padded)
_C_PAD = 8     # padded index-column count


def fixed_embedding_table(c_in, d_model):
    """Deterministic sinusoidal table, identical to FixedEmbedding.__init__."""
    position = jnp.arange(c_in, dtype=jnp.float32)[:, None]                    # (c_in, 1)
    div_term = jnp.exp(
        jnp.arange(0, d_model, 2, dtype=jnp.float32) * (-(math.log(10000.0) / d_model))
    )                                                                          # (d_model//2,)
    w = jnp.zeros((c_in, d_model), dtype=jnp.float32)
    w = w.at[:, 0::2].set(jnp.sin(position * div_term))
    w = w.at[:, 1::2].set(jnp.cos(position * div_term))
    return w


def _round_up(a, b):
    return (a + b - 1) // b * b


def _temporal_embedding_kernel(x_ref, table_ref, o_ref, *, num_feats):
    """x_ref: (TM, 8) int32 offset indices; table_ref: (128, D) f32; o_ref: (TM, D)."""
    tm = x_ref.shape[0]
    k = table_ref.shape[0]
    iota = jax.lax.broadcasted_iota(jnp.int32, (tm, k), 1)                     # (TM, 128)
    # Feature row-ranges are disjoint (offsets added wrapper-side), so the
    # multi-hot is an OR of the per-feature one-hots; cast to f32 exactly once.
    hot = iota == x_ref[:, 0][:, None]
    for c in range(1, num_feats):
        hot = jnp.logical_or(hot, iota == x_ref[:, c][:, None])
    # Single K=128 MXU matmul per tile (fills v5e MXU rows, half-tile on v6e/v7x).
    o_ref[...] = jnp.dot(hot.astype(jnp.float32), table_ref[...],
                         preferred_element_type=jnp.float32)


def temporal_embedding(x, d_model, freq="h", tm=512):
    """x: int array [B, L, C] with C >= 5 if freq=='t' else C >= 4."""
    B, L, C = x.shape
    use_minute = (freq == "t")
    num_feats = 5 if use_minute else 4
    assert C >= num_feats, f"need at least {num_feats} time-feature columns"

    # --- parameter setup (fixed, non-trainable): one concatenated table -------
    sizes = [MONTH_SIZE, DAY_SIZE, WEEKDAY_SIZE, HOUR_SIZE, MINUTE_SIZE][:num_feats]
    table = jnp.concatenate([fixed_embedding_table(s, d_model) for s in sizes], axis=0)
    table = jnp.pad(table, ((0, _K_ROWS - table.shape[0]), (0, 0)))            # (128, D)

    # per-feature row offsets into the concatenated table
    row_off, acc = [], 0
    for s in sizes:
        row_off.append(acc)
        acc += s
    offsets = jnp.asarray(row_off, dtype=jnp.int32)                            # (num_feats,)

    # --- index preprocessing (offsets folded in wrapper-side) -----------------
    N = B * L
    x_idx = x[..., :num_feats].astype(jnp.int32).reshape(N, num_feats) + offsets[None, :]
    # pad to 8 columns (padded columns point at a zero row and are never read)
    x_idx = jnp.pad(x_idx, ((0, 0), (0, _C_PAD - num_feats)),
                    constant_values=_K_ROWS - 1)

    # --- row-tile sizing: large tile, clamped by a v7x-safe VMEM budget -------
    tm = max(8, (tm // 8) * 8)
    vmem_budget = 24 * 1024 * 1024                       # conservative (v7x scoped ~32 MiB)
    table_bytes = 2 * _K_ROWS * d_model * 4              # table double-buffered by BlockSpec
    per_row_bytes = 2 * 4 * (_C_PAD + d_model)           # double-buffered in + out rows
    tm_max = max(8, ((vmem_budget - table_bytes) // per_row_bytes) // 8 * 8)
    tm_eff = max(8, min(tm, tm_max, _round_up(N, 8)))

    n_pad = (-N) % tm_eff
    if n_pad:
        x_idx = jnp.pad(x_idx, ((0, n_pad), (0, 0)))     # pad rows (sliced off below)
    Np = N + n_pad

    kernel = functools.partial(_temporal_embedding_kernel, num_feats=num_feats)

    out = pl.pallas_call(
        kernel,
        out_shape=jax.ShapeDtypeStruct((Np, d_model), jnp.float32),
        grid=(Np // tm_eff,),
        in_specs=[
            pl.BlockSpec((tm_eff, _C_PAD), lambda i: (i, 0)),        # offset indices
            pl.BlockSpec((_K_ROWS, d_model), lambda i: (0, 0)),      # resident table
        ],
        out_specs=pl.BlockSpec((tm_eff, d_model), lambda i: (i, 0)),
        compiler_params=pltpu.CompilerParams(dimension_semantics=("parallel",)),
    )(x_idx, table)

    return out[:N].reshape(B, L, d_model)


def temporal_embedding_ref(x, d_model, freq="h"):
    """Pure-JAX reference matching the PyTorch forward."""
    month_w = fixed_embedding_table(MONTH_SIZE, d_model)
    day_w = fixed_embedding_table(DAY_SIZE, d_model)
    weekday_w = fixed_embedding_table(WEEKDAY_SIZE, d_model)
    hour_w = fixed_embedding_table(HOUR_SIZE, d_model)
    minute_w = fixed_embedding_table(MINUTE_SIZE, d_model)
    x = x.astype(jnp.int32)
    out = (hour_w[x[:, :, 3]] + weekday_w[x[:, :, 2]] +
           day_w[x[:, :, 1]] + month_w[x[:, :, 0]])
    if freq == "t":
        out = out + minute_w[x[:, :, 4]]
    return out


if __name__ == "__main__":
    B, L, d_model = 2, 8, 32
    key = jax.random.PRNGKey(0)
    k0, k1, k2, k3, k4 = jax.random.split(key, 5)
    # time-feature indices: [month, day, weekday, hour, minute]
    x = jnp.stack(
        [
            jax.random.randint(k0, (B, L), 0, MONTH_SIZE),
            jax.random.randint(k1, (B, L), 0, DAY_SIZE),
            jax.random.randint(k2, (B, L), 0, WEEKDAY_SIZE),
            jax.random.randint(k3, (B, L), 0, HOUR_SIZE),
            jax.random.randint(k4, (B, L), 0, MINUTE_SIZE),
        ],
        axis=-1,
    )  # (B, L, 5) int32

    ok = True
    for freq in ("h", "t"):
        out = jax.block_until_ready(temporal_embedding(x, d_model, freq=freq))
        ref = temporal_embedding_ref(x, d_model, freq=freq)
        assert out.shape == (B, L, d_model) and out.dtype == jnp.float32
        ok = ok and bool(jnp.allclose(out, ref, atol=1e-5, rtol=1e-5))

    if ok:
        print("KERNEL_OK")
</pallas_src>

<mosaic_0001>
module attributes {stable_mosaic.version = 11 : i64} {
  func.func @_temporal_embedding_kernel(%arg0: i32, %arg1: memref<16x8xi32, #tpu.memory_space<vmem>>, %arg2: memref<128x32xf32, #tpu.memory_space<vmem>>, %arg3: memref<16x32xf32, #tpu.memory_space<vmem>>) attributes {dimension_semantics = [#tpu.dimension_semantics<parallel>], iteration_bounds = array<i64: 1>, scalar_prefetch = 0 : i64, scratch_operands = 0 : i64, tpu.core_type = #tpu.core_type<tc>, window_params = [{transform_indices = @transform_0, window_bounds = array<i64: 16, 8>}, {pipeline_mode = #tpu.pipeline_mode<synchronous>, transform_indices = @transform_1, window_bounds = array<i64: 128, 32>}, {transform_indices = @transform_2, window_bounds = array<i64: 16, 32>}]} {
    %0 = tpu.iota {dimensions = array<i32: 1>} : vector<16x128xi32>
    %c0 = arith.constant 0 : index
    %c0_0 = arith.constant 0 : index
    %1 = vector.load %arg1[%c0, %c0_0] : memref<16x8xi32, #tpu.memory_space<vmem>>, vector<16x1xi32>
    %2 = vector.shape_cast %1 : vector<16x1xi32> to vector<16xi32>
    %3 = vector.shape_cast %2 : vector<16xi32> to vector<16x1xi32>
    %4 = vector.broadcast %3 : vector<16x1xi32> to vector<16x128xi32>
    %5 = arith.cmpi eq, %0, %4 : vector<16x128xi32>
    %c0_1 = arith.constant 0 : index
    %c1 = arith.constant 1 : index
    %6 = vector.load %arg1[%c0_1, %c1] : memref<16x8xi32, #tpu.memory_space<vmem>>, vector<16x1xi32>
    %7 = vector.shape_cast %6 : vector<16x1xi32> to vector<16xi32>
    %8 = vector.shape_cast %7 : vector<16xi32> to vector<16x1xi32>
    %9 = vector.broadcast %8 : vector<16x1xi32> to vector<16x128xi32>
    %10 = arith.cmpi eq, %0, %9 : vector<16x128xi32>
    %11 = arith.ori %5, %10 : vector<16x128xi1>
    %c0_2 = arith.constant 0 : index
    %c2 = arith.constant 2 : index
    %12 = vector.load %arg1[%c0_2, %c2] : memref<16x8xi32, #tpu.memory_space<vmem>>, vector<16x1xi32>
    %13 = vector.shape_cast %12 : vector<16x1xi32> to vector<16xi32>
    %14 = vector.shape_cast %13 : vector<16xi32> to vector<16x1xi32>
    %15 = vector.broadcast %14 : vector<16x1xi32> to vector<16x128xi32>
    %16 = arith.cmpi eq, %0, %15 : vector<16x128xi32>
    %17 = arith.ori %11, %16 : vector<16x128xi1>
    %c0_3 = arith.constant 0 : index
    %c3 = arith.constant 3 : index
    %18 = vector.load %arg1[%c0_3, %c3] : memref<16x8xi32, #tpu.memory_space<vmem>>, vector<16x1xi32>
    %19 = vector.shape_cast %18 : vector<16x1xi32> to vector<16xi32>
    %20 = vector.shape_cast %19 : vector<16xi32> to vector<16x1xi32>
    %21 = vector.broadcast %20 : vector<16x1xi32> to vector<16x128xi32>
    %22 = arith.cmpi eq, %0, %21 : vector<16x128xi32>
    %23 = arith.ori %17, %22 : vector<16x128xi1>
    %24 = arith.extui %23 : vector<16x128xi1> to vector<16x128xi32>
    %25 = arith.sitofp %24 : vector<16x128xi32> to vector<16x128xf32>
    %c0_4 = arith.constant 0 : index
    %c0_5 = arith.constant 0 : index
    %26 = vector.load %arg2[%c0_4, %c0_5] : memref<128x32xf32, #tpu.memory_space<vmem>>, vector<128x32xf32>
    %cst = arith.constant dense<0.000000e+00> : vector<16x32xf32>
    %27 = tpu.matmul %25, %26, %cst {dimension_numbers = #tpu.dot_dimension_numbers<[1], [0], [0], [1], [0, 0, 1, 1], [], []>} : vector<16x128xf32>, vector<128x32xf32>, vector<16x32xf32> -> vector<16x32xf32>
    %c0_6 = arith.constant 0 : index
    %c0_7 = arith.constant 0 : index
    %28 = vector.load %arg3[%c0_6, %c0_7] : memref<16x32xf32, #tpu.memory_space<vmem>>, vector<16x32xf32>
    tpu.vector_store %arg3[%c0_6, %c0_7], %27 {strides = array<i32>} : memref<16x32xf32, #tpu.memory_space<vmem>>, vector<16x32xf32>,
    return
  }
  func.func @transform_0(%arg0: i32) -> (i32, i32) {
    %c0_i32 = arith.constant 0 : i32
    %c0_i32_0 = arith.constant 0 : i32
    return %arg0, %c0_i32 : i32, i32
  }
  func.func @transform_1(%arg0: i32) -> (i32, i32) {
    %c0_i32 = arith.constant 0 : i32
    %c0_i32_0 = arith.constant 0 : i32
    %c0_i32_1 = arith.constant 0 : i32
    return %c0_i32, %c0_i32_0 : i32, i32
  }
  func.func @transform_2(%arg0: i32) -> (i32, i32) {
    %c0_i32 = arith.constant 0 : i32
    %c0_i32_0 = arith.constant 0 : i32
    return %arg0, %c0_i32 : i32, i32
  }
}

</mosaic_0001>

<llo_original>
// kernel: tpu_custom_call.1
$region0: #{tpu_custom_call.1}
  #allocation0 [shape = 'u32[]', space=smem, size = 0x4, offset = 0x4, fixed_abs, tag = 'smem constant byte address 0x4 - core index']
  #allocation1 [shape = 'u32[144,128]{1,0:T(1,128)}', space=vmem, size = 0x12000, scoped, tag = 'internal scratch']
  %s0 = inlined_call_operand.vmem [shape: s32[16,8], index: 0, kind: input, shape index: {}]
  %s1 = inlined_call_operand.vmem [shape: f32[128,32], index: 1, kind: input, shape index: {}]
  %s2 = inlined_call_operand.hbm [shape: f32[16,32], index: 2, kind: output, shape index: {}]
  %s3 = sld [smem:[#allocation0]]
  $region18: #{tpu_custom_call.1} parent=0
    _
  %s5 = ssub.s32 1, %s3
  %s6 = scalar_select 0, %s5, %s3
  $region1: #{tpu_custom_call.1} parent=0
    #allocation2 [shape = 'u8[8192]{0}', space=vmem, size = 0x2000, scoped, tag = 'output window, operand 0, single buffered']
    #allocation3 [shape = 's32[1]{0}', space=sflag, size = 0x4, scoped, tag = 'scoped memory for tpu_custom_call.1']
    %7 = vsyncpa [#allocation3], 0
    // Predicated region
    $region2: #{tpu_custom_call.1} parent=1 // pred_check
      _
    $region3: #{tpu_custom_call.1} parent=1 // pred_check_branch
      %9 = sbr.rel (0) target = $region5
    $region4: #{tpu_custom_call.1} parent=1 // pred_region
      _
    $region5: #{tpu_custom_call.1} parent=1 // pred_fallthru
      _
    // Predicated region
    $region6: #{tpu_custom_call.1} parent=1 // pred_check
      _
    $region7: #{tpu_custom_call.1} parent=1 // pred_check_branch
      %11 = sbr.rel (0) target = $region9
    $region8: #{tpu_custom_call.1} parent=1 // pred_region
      _
    $region9: #{tpu_custom_call.1} parent=1 // pred_fallthru
      _
    %v12 = vlaneseq
    %v13 = vand.u32 %v12, 127
    %v14 = vld [vmem:[%s0] sm:$0xff]
    %v15 = vld [vmem:[%s0 + $0x8] sm:$0xff]
    %16 = vset.pattern.permute.xlu0 0
    %17 = vperm.xlu0 %16, %v14
    %v18 = vpop.permute.xlu0 %17
    %19 = vset.pattern.permute.xlu0 0
    %20 = vperm.xlu0 %19, %v15
    %v21 = vpop.permute.xlu0 %20
    %vm22 = vcmp.eq.s32.totalorder %v13, %v18
    %vm23 = vcmp.eq.s32.totalorder %v13, %v21
    %24 = vset.pattern.permute.xlu0 1
    %25 = vperm.xlu0 %24, %v14
    %v26 = vpop.permute.xlu0 %25
    %27 = vset.pattern.permute.xlu0 1
    %28 = vperm.xlu0 %27, %v15
    %v29 = vpop.permute.xlu0 %28
    %vm30 = vcmp.eq.s32.totalorder %v13, %v26
    %vm31 = vcmp.eq.s32.totalorder %v13, %v29
    %vm32 = vmor %vm22, %vm30
    %vm33 = vmor %vm23, %vm31
    %34 = vset.pattern.permute.xlu0 2
    %35 = vperm.xlu0 %34, %v14
    %v36 = vpop.permute.xlu0 %35
    %37 = vset.pattern.permute.xlu0 2
    %38 = vperm.xlu0 %37, %v15
    %v39 = vpop.permute.xlu0 %38
    %vm40 = vcmp.eq.s32.totalorder %v13, %v36
    %vm41 = vcmp.eq.s32.totalorder %v13, %v39
    %vm42 = vmor %vm32, %vm40
    %vm43 = vmor %vm33, %vm41
    %44 = vset.pattern.permute.xlu0 3
    %45 = vperm.xlu0 %44, %v14
    %v46 = vpop.permute.xlu0 %45
    %47 = vset.pattern.permute.xlu0 3
    %48 = vperm.xlu0 %47, %v15
    %v49 = vpop.permute.xlu0 %48
    %vm50 = vcmp.eq.s32.totalorder %v13, %v46
    %vm51 = vcmp.eq.s32.totalorder %v13, %v49
    %vm52 = vmor %vm42, %vm50
    %vm53 = vmor %vm43, %vm51
    %v54 = vsel %vm52, 1, 0
    %v55 = vsel %vm53, 1, 0
    %v56 = vcvt.s32.f32 %v54
    %v57 = vcvt.s32.f32 %v55
    %v58 = vld [vmem:[%s1] sm:$0xff]
    %v59 = vld [vmem:[%s1 + $0x8] sm:$0xff]
    %v60 = vld [vmem:[%s1 + $0x10] sm:$0xff]
    %v61 = vld [vmem:[%s1 + $0x18] sm:$0xff]
    %v62 = vld [vmem:[%s1 + $0x20] sm:$0xff]
    %v63 = vld [vmem:[%s1 + $0x28] sm:$0xff]
    %v64 = vld [vmem:[%s1 + $0x30] sm:$0xff]
    %v65 = vld [vmem:[%s1 + $0x38] sm:$0xff]
    %v66 = vld [vmem:[%s1 + $0x40] sm:$0xff]
    %v67 = vld [vmem:[%s1 + $0x48] sm:$0xff]
    %v68 = vld [vmem:[%s1 + $0x50] sm:$0xff]
    %v69 = vld [vmem:[%s1 + $0x58] sm:$0xff]
    %v70 = vld [vmem:[%s1 + $0x60] sm:$0xff]
    %v71 = vld [vmem:[%s1 + $0x68] sm:$0xff]
    %v72 = vld [vmem:[%s1 + $0x70] sm:$0xff]
    %v73 = vld [vmem:[%s1 + $0x78] sm:$0xff]
    %74 = vmatprep.subr.mxu0 0.0
    %75 = vmatpush1.msra.mxu0 %v58
    %76 = vmatprep.subr.mxu0 0.0
    %77 = vmatpush1.msra.mxu0 %v59
    %78 = vmatprep.subr.mxu0 0.0
    %79 = vmatpush1.msra.mxu0 %v60
    %80 = vmatprep.subr.mxu0 0.0
    %81 = vmatpush1.msra.mxu0 %v61
    %82 = vmatprep.subr.mxu0 0.0
    %83 = vmatpush1.msra.mxu0 %v62
    %84 = vmatprep.subr.mxu0 0.0
    %85 = vmatpush1.msra.mxu0 %v63
    %86 = vmatprep.subr.mxu0 0.0
    %87 = vmatpush1.msra.mxu0 %v64
    %88 = vmatprep.subr.mxu0 0.0
    %89 = vmatpush1.msra.mxu0 %v65
    %90 = vmatprep.subr.mxu0 0.0
    %91 = vmatpush1.msra.mxu0 %v66
    %92 = vmatprep.subr.mxu0 0.0
    %93 = vmatpush1.msra.mxu0 %v67
    %94 = vmatprep.subr.mxu0 0.0
    %95 = vmatpush1.msra.mxu0 %v68
    %96 = vmatprep.subr.mxu0 0.0
    %97 = vmatpush1.msra.mxu0 %v69
    %98 = vmatprep.subr.mxu0 0.0
    %99 = vmatpush1.msra.mxu0 %v70
    %100 = vmatprep.subr.mxu0 0.0
    %101 = vmatpush1.msra.mxu0 %v71
    %102 = vmatprep.subr.mxu0 0.0
    %103 = vmatpush1.msra.mxu0 %v72
    %104 = vmatprep.subr.mxu0 0.0
    %105 = vmatpush1.msra.mxu0 %v73
    %106 = vmatprep.subr.mxu0 0.0
    %107 = vmatpush1.msra.mxu0 0.0
    %108 = vmatprep.subr.mxu0 0.0
    %109 = vmatpush1.msra.mxu0 0.0
    %110 = vmatprep.subr.mxu0 0.0
    %111 = vmatpush1.msra.mxu0 0.0
    %112 = vmatprep.subr.mxu0 0.0
    %113 = vmatpush1.msra.mxu0 0.0
    %114 = vmatprep.subr.mxu0 0.0
    %115 = vmatpush1.msra.mxu0 0.0
    %116 = vmatprep.subr.mxu0 0.0
    %117 = vmatpush1.msra.mxu0 0.0
    %118 = vmatprep.subr.mxu0 0.0
    %119 = vmatpush1.msra.mxu0 0.0
    %120 = vmatprep.subr.mxu0 0.0
    %121 = vmatpush1.msra.mxu0 0.0
    %122 = vmatprep.subr.mxu0 0.0
    %123 = vmatpush1.msra.mxu0 0.0
    %124 = vmatprep.subr.mxu0 0.0
    %125 = vmatpush1.msra.mxu0 0.0
    %126 = vmatprep.subr.mxu0 0.0
    %127 = vmatpush1.msra.mxu0 0.0
    %128 = vmatprep.subr.mxu0 0.0
    %129 = vmatpush1.msra.mxu0 0.0
    %130 = vmatprep.subr.mxu0 0.0
    %131 = vmatpush1.msra.mxu0 0.0
    %132 = vmatprep.subr.mxu0 0.0
    %133 = vmatpush1.msra.mxu0 0.0
    %134 = vmatprep.subr.mxu0 0.0
    %135 = vmatpush1.msra.mxu0 0.0
    %136 = vmatprep.subr.mxu0 0.0
    %137 = vmatpush1.msra.mxu0 0.0
    %138 = vmatprep.mubr.f32.mxu0 0.0
    %139 = vmatmul.mubr.f32.gmra.mrb[0].mxu0 %v56
    %v140 = vpop.f32.mrb[0].mxu0
    %v141 = vadd.f32 0.0, %v140
    %v142 = vpop.f32.mrb[0].mxu0
    %143 = vmatprep.mubr.f32.mxu0 0.0
    %144 = vmatmul.mubr.f32.gmra.mrb[0].mxu0 %v57
    %v145 = vpop.f32.mrb[0].mxu0
    %v146 = vadd.f32 0.0, %v145
    %v147 = vpop.f32.mrb[0].mxu0
    %148 = vdwg.mxu0
    %vm149 = vcmask 261120
    %150 = vst.msk [vmem:[#allocation2] sm:$0xff] %vm149, %v141
    %151 = vst.msk [vmem:[#allocation2 + $0x8] sm:$0xff] %vm149, %v146
    // Predicated region
    $region10: #{tpu_custom_call.1} parent=1 // pred_check
      _
    $region11: #{tpu_custom_call.1} parent=1 // pred_check_branch
      %153 = sbr.rel (0) target = $region13
    $region12: #{tpu_custom_call.1} parent=1 // pred_region
      %s155 = ssub.s32 256, 256
      %156 = vsyncadd [#allocation3], %s155
      %s157 = sshll.u32 [#allocation2], 4
      %s158 = int_to_ptr.vmem [resolvable:$true] %s157
      %163 = dma.vmem_to_hbm [thread:$0]  %s158, 256, %s2, [#allocation3], 128, 128, 8
    $region13: #{tpu_custom_call.1} parent=1 // pred_fallthru
      _
    // Predicated region
    $region14: #{tpu_custom_call.1} parent=1 // pred_check
      _
    $region15: #{tpu_custom_call.1} parent=1 // pred_check_branch
      %165 = sbr.rel (0) target = $region17
    $region16: #{tpu_custom_call.1} parent=1 // pred_region
      %166 = dma.done [#allocation3], 256
    $region17: #{tpu_custom_call.1} parent=1 // pred_fallthru
      _
    %167 = vsyncpa [#allocation3], 1

</llo_original>
